<compile_context>
chip_gen: v5e
topology: v5e:2x2
jax: 0.10.0
libtpu: 0.0.40
codegen_flags: <defaults>
</compile_context>

<pallas_src>
import functools

import jax
import jax.numpy as jnp
from jax.experimental import pallas as pl
from jax.experimental.pallas import tpu as pltpu

_LANES = 128  # vreg lane width: pad all feature dims to this for lane-dense MXU work
_VMEM = pl.BlockSpec(memory_space=pltpu.MemorySpace.VMEM)


# ----------------------------------------------------------------------------
# Fused Pallas kernel: all GCN layers + final linear head in one launch.
# ----------------------------------------------------------------------------
def _make_fused_kernel(num_layers):
    def kernel(a_ref, x_ref, wc_ref, bc_ref, wf_ref, bf_ref, o_ref):
        a = a_ref[...]          # (Np, Np) bf16 normalized adjacency, VMEM-resident
        h = x_ref[...]          # (Np, F_PAD) bf16 activations, VMEM-resident across layers
        for i in range(num_layers):  # static Python unroll (num_layers is compile-time)
            # h @ W  : bf16 x bf16 -> f32 accumulate
            xw = jnp.dot(h, wc_ref[i], preferred_element_type=jnp.float32)
            # A @ (hW) : bf16 x bf16 -> f32 accumulate (dominant N^2 term)
            ax = jnp.dot(a, xw.astype(jnp.bfloat16),
                         preferred_element_type=jnp.float32)
            # bias + ReLU in f32, then back to bf16 for the next layer's matmul
            h = jnp.maximum(ax + bc_ref[i], 0.0).astype(jnp.bfloat16)
            # dropout: identity in eval mode
            # TODO(synk): training-mode dropout (stateful PRNG masking) not implemented
        # final linear head: bf16 matmul, f32 accumulation + f32 bias, f32 output
        o_ref[...] = (
            jnp.dot(h, wf_ref[...], preferred_element_type=jnp.float32) + bf_ref[...]
        )

    return kernel


# ----------------------------------------------------------------------------
# Glue: PyG-style gcn_norm dense adjacency (plain JAX, runs at trace time)
# ----------------------------------------------------------------------------
def gcn_norm_dense(edge_index, num_nodes):
    """Dense D^{-1/2} (A + I) D^{-1/2}, matching PyG gcn_norm defaults."""
    src = edge_index[0]
    dst = edge_index[1]
    loop = jnp.arange(num_nodes, dtype=edge_index.dtype)
    src = jnp.concatenate([src, loop])
    dst = jnp.concatenate([dst, loop])
    w = jnp.ones(src.shape[0], dtype=jnp.float32)
    deg = jnp.zeros((num_nodes,), jnp.float32).at[dst].add(w)
    dinv = jnp.where(deg > 0, 1.0 / jnp.sqrt(deg), 0.0)
    norm = dinv[src] * w * dinv[dst]
    # message flows src -> dst : out[dst] += norm * x[src]  =>  A[dst, src]
    return jnp.zeros((num_nodes, num_nodes), jnp.float32).at[dst, src].add(norm)


def _pad2d(a, rows, cols):
    return jnp.pad(a, ((0, rows - a.shape[0]), (0, cols - a.shape[1])))


def _round_up(x, m):
    return ((x + m - 1) // m) * m


# ----------------------------------------------------------------------------
# Model: deterministic parameter init + forward
# ----------------------------------------------------------------------------
def init_params(key, input_dim, hidden_dim, output_dim, num_layers):
    params = {"conv_w": [], "conv_b": []}
    dims = [input_dim] + [hidden_dim] * num_layers
    for i in range(num_layers):
        key, k = jax.random.split(key)
        fan_in, fan_out = dims[i], dims[i + 1]
        w = jax.random.normal(k, (fan_in, fan_out), jnp.float32) * (1.0 / jnp.sqrt(fan_in))
        params["conv_w"].append(w)
        params["conv_b"].append(jnp.zeros((fan_out,), jnp.float32))
    key, k1, k2 = jax.random.split(key, 3)
    # torch.nn.Linear weight is (out, in); store transposed (in, out) for x @ W
    params["fc_w"] = jax.random.normal(k1, (hidden_dim, output_dim), jnp.float32) * (
        1.0 / jnp.sqrt(hidden_dim)
    )
    params["fc_b"] = jax.random.normal(k2, (output_dim,), jnp.float32) * 0.01
    return params


def stgnn_forward(params, x, edge_index):
    n, f_in = x.shape
    num_layers = len(params["conv_w"])
    hidden_dim = params["conv_w"][-1].shape[1]
    output_dim = params["fc_w"].shape[1]

    f_pad = _LANES
    assert max(f_in, hidden_dim, output_dim) <= f_pad, "feature dims must fit one lane tile"

    # Lane-dense / contraction-deep node padding:
    #   small graphs -> one full 128-lane tile; larger -> multiple of 256 so the
    #   contraction depth of A @ (hW) fills the 256-deep v6e/v7x MXU.
    n_pad = 128 if n <= 128 else _round_up(n, 256)

    # Normalized adjacency (zero-padded rows/cols do not affect real nodes).
    a_norm = _pad2d(gcn_norm_dense(edge_index, n), n_pad, n_pad).astype(jnp.bfloat16)
    x_p = _pad2d(x, n_pad, f_pad).astype(jnp.bfloat16)

    # Stack all conv layers into lane-dense (L, 128, 128) bf16 / (L, 1, 128) f32 arrays.
    wc = jnp.stack([_pad2d(w, f_pad, f_pad) for w in params["conv_w"]]).astype(jnp.bfloat16)
    bc = jnp.stack([_pad2d(b.reshape(1, -1), 1, f_pad) for b in params["conv_b"]])
    wf = _pad2d(params["fc_w"], f_pad, f_pad).astype(jnp.bfloat16)
    bf = _pad2d(params["fc_b"].reshape(1, -1), 1, f_pad)

    # ---- VMEM budget for the fully-resident design ---------------------------
    resident_bytes = (
        a_norm.size * 2            # bf16 A
        + x_p.size * 2             # bf16 x / h
        + wc.size * 2 + wf.size * 2
        + bc.size * 4 + bf.size * 4
        + n_pad * f_pad * 4        # f32 output tile
        + n_pad * f_pad * 4 * 2    # in-kernel f32 temporaries (xw, ax)
    )
    vmem_limit = min(max(2 * resident_bytes + (4 << 20), 16 << 20), 64 << 20)
    if resident_bytes > (48 << 20):
        # TODO(synk): row-tiled grid over A (pl.ANY + double-buffered h scratch)
        # for graphs whose resident set exceeds VMEM (esp. v7x's 64 MiB).
        raise NotImplementedError("graph too large for the fully VMEM-resident path")

    flops = num_layers * (2 * n_pad * f_pad * f_pad + 2 * n_pad * n_pad * f_pad)
    flops += 2 * n_pad * f_pad * f_pad
    bytes_accessed = int(
        a_norm.size * 2 + x_p.size * 2 + wc.size * 2 + wf.size * 2
        + bc.size * 4 + bf.size * 4 + n_pad * f_pad * 4
    )

    out_p = pl.pallas_call(
        _make_fused_kernel(num_layers),
        out_shape=jax.ShapeDtypeStruct((n_pad, f_pad), jnp.float32),
        in_specs=[_VMEM] * 6,
        out_specs=_VMEM,
        compiler_params=pltpu.CompilerParams(vmem_limit_bytes=int(vmem_limit)),
        cost_estimate=pl.CostEstimate(
            flops=int(flops), transcendentals=0, bytes_accessed=bytes_accessed
        ),
    )(a_norm, x_p, wc, bc, wf, bf)

    # Lane-dense kernel output; slice back to the logical (N, output_dim) outside.
    return out_p[:n, :output_dim]


# ----------------------------------------------------------------------------
if __name__ == "__main__":
    # small shapes consistent with the module
    num_nodes = 16
    input_dim = 8
    hidden_dim = 32
    output_dim = 4
    num_layers = 2

    key = jax.random.PRNGKey(0)
    key, kx = jax.random.split(key)
    x = jax.random.normal(kx, (num_nodes, input_dim), jnp.float32)
    edge_index = jnp.array([[0], [0]], dtype=jnp.int32)

    params = init_params(key, input_dim, hidden_dim, output_dim, num_layers)

    fwd = jax.jit(functools.partial(stgnn_forward, params))
    out = fwd(x, edge_index)
    jax.block_until_ready(out)
    assert out.shape == (num_nodes, output_dim)
    print("KERNEL_OK")
</pallas_src>

<mosaic_0001>
module attributes {stable_mosaic.version = 11 : i64} {
  func.func @kernel(%arg0: memref<128x128xbf16, #tpu.memory_space<vmem>>, %arg1: memref<128x128xbf16, #tpu.memory_space<vmem>>, %arg2: memref<2x128x128xbf16, #tpu.memory_space<vmem>>, %arg3: memref<2x1x128xf32, #tpu.memory_space<vmem>>, %arg4: memref<128x128xbf16, #tpu.memory_space<vmem>>, %arg5: memref<1x128xf32, #tpu.memory_space<vmem>>, %arg6: memref<128x128xf32, #tpu.memory_space<vmem>>) attributes {dimension_semantics = [], scalar_prefetch = 0 : i64, scratch_operands = 0 : i64, tpu.core_type = #tpu.core_type<tc>} {
    %c0 = arith.constant 0 : index
    %c0_0 = arith.constant 0 : index
    %0 = vector.load %arg0[%c0, %c0_0] : memref<128x128xbf16, #tpu.memory_space<vmem>>, vector<128x128xbf16>
    %c0_1 = arith.constant 0 : index
    %c0_2 = arith.constant 0 : index
    %1 = vector.load %arg1[%c0_1, %c0_2] : memref<128x128xbf16, #tpu.memory_space<vmem>>, vector<128x128xbf16>
    %c0_3 = arith.constant 0 : index
    %c0_4 = arith.constant 0 : index
    %c0_5 = arith.constant 0 : index
    %2 = vector.load %arg2[%c0_3, %c0_4, %c0_5] : memref<2x128x128xbf16, #tpu.memory_space<vmem>>, vector<1x128x128xbf16>
    %3 = vector.shape_cast %2 : vector<1x128x128xbf16> to vector<128x128xbf16>
    %cst = arith.constant dense<0.000000e+00> : vector<128x128xf32>
    %4 = tpu.matmul %1, %3, %cst {dimension_numbers = #tpu.dot_dimension_numbers<[1], [0], [0], [1], [0, 0, 1, 1], [], []>} : vector<128x128xbf16>, vector<128x128xbf16>, vector<128x128xf32> -> vector<128x128xf32>
    %5 = arith.truncf %4 : vector<128x128xf32> to vector<128x128xbf16>
    %cst_6 = arith.constant dense<0.000000e+00> : vector<128x128xf32>
    %6 = tpu.matmul %0, %5, %cst_6 {dimension_numbers = #tpu.dot_dimension_numbers<[1], [0], [0], [1], [0, 0, 1, 1], [], []>} : vector<128x128xbf16>, vector<128x128xbf16>, vector<128x128xf32> -> vector<128x128xf32>
    %c0_7 = arith.constant 0 : index
    %c0_8 = arith.constant 0 : index
    %c0_9 = arith.constant 0 : index
    %7 = vector.load %arg3[%c0_7, %c0_8, %c0_9] : memref<2x1x128xf32, #tpu.memory_space<vmem>>, vector<1x1x128xf32>
    %8 = vector.shape_cast %7 : vector<1x1x128xf32> to vector<1x128xf32>
    %9 = vector.broadcast %8 : vector<1x128xf32> to vector<128x128xf32>
    %10 = arith.addf %6, %9 : vector<128x128xf32>
    %cst_10 = arith.constant 0.000000e+00 : f32
    %11 = vector.broadcast %cst_10 : f32 to vector<128x128xf32>
    %12 = arith.maximumf %10, %11 : vector<128x128xf32>
    %13 = arith.truncf %12 : vector<128x128xf32> to vector<128x128xbf16>
    %c1 = arith.constant 1 : index
    %c0_11 = arith.constant 0 : index
    %c0_12 = arith.constant 0 : index
    %14 = vector.load %arg2[%c1, %c0_11, %c0_12] : memref<2x128x128xbf16, #tpu.memory_space<vmem>>, vector<1x128x128xbf16>
    %15 = vector.shape_cast %14 : vector<1x128x128xbf16> to vector<128x128xbf16>
    %cst_13 = arith.constant dense<0.000000e+00> : vector<128x128xf32>
    %16 = tpu.matmul %13, %15, %cst_13 {dimension_numbers = #tpu.dot_dimension_numbers<[1], [0], [0], [1], [0, 0, 1, 1], [], []>} : vector<128x128xbf16>, vector<128x128xbf16>, vector<128x128xf32> -> vector<128x128xf32>
    %17 = arith.truncf %16 : vector<128x128xf32> to vector<128x128xbf16>
    %cst_14 = arith.constant dense<0.000000e+00> : vector<128x128xf32>
    %18 = tpu.matmul %0, %17, %cst_14 {dimension_numbers = #tpu.dot_dimension_numbers<[1], [0], [0], [1], [0, 0, 1, 1], [], []>} : vector<128x128xbf16>, vector<128x128xbf16>, vector<128x128xf32> -> vector<128x128xf32>
    %c1_15 = arith.constant 1 : index
    %c0_16 = arith.constant 0 : index
    %c0_17 = arith.constant 0 : index
    %19 = vector.load %arg3[%c1_15, %c0_16, %c0_17] : memref<2x1x128xf32, #tpu.memory_space<vmem>>, vector<1x1x128xf32>
    %20 = vector.shape_cast %19 : vector<1x1x128xf32> to vector<1x128xf32>
    %21 = vector.broadcast %20 : vector<1x128xf32> to vector<128x128xf32>
    %22 = arith.addf %18, %21 : vector<128x128xf32>
    %cst_18 = arith.constant 0.000000e+00 : f32
    %23 = vector.broadcast %cst_18 : f32 to vector<128x128xf32>
    %24 = arith.maximumf %22, %23 : vector<128x128xf32>
    %25 = arith.truncf %24 : vector<128x128xf32> to vector<128x128xbf16>
    %c0_19 = arith.constant 0 : index
    %c0_20 = arith.constant 0 : index
    %26 = vector.load %arg4[%c0_19, %c0_20] : memref<128x128xbf16, #tpu.memory_space<vmem>>, vector<128x128xbf16>
    %cst_21 = arith.constant dense<0.000000e+00> : vector<128x128xf32>
    %27 = tpu.matmul %25, %26, %cst_21 {dimension_numbers = #tpu.dot_dimension_numbers<[1], [0], [0], [1], [0, 0, 1, 1], [], []>} : vector<128x128xbf16>, vector<128x128xbf16>, vector<128x128xf32> -> vector<128x128xf32>
    %c0_22 = arith.constant 0 : index
    %c0_23 = arith.constant 0 : index
    %28 = vector.load %arg5[%c0_22, %c0_23] : memref<1x128xf32, #tpu.memory_space<vmem>>, vector<1x128xf32>
    %29 = vector.broadcast %28 : vector<1x128xf32> to vector<128x128xf32>
    %30 = arith.addf %27, %29 : vector<128x128xf32>
    %c0_24 = arith.constant 0 : index
    %c0_25 = arith.constant 0 : index
    %31 = vector.load %arg6[%c0_24, %c0_25] : memref<128x128xf32, #tpu.memory_space<vmem>>, vector<128x128xf32>
    tpu.vector_store %arg6[%c0_24, %c0_25], %30 {strides = array<i32>} : memref<128x128xf32, #tpu.memory_space<vmem>>, vector<128x128xf32>,
    return
  }
}

</mosaic_0001>

<llo_original>
// kernel: mul.1
$region0: #{mul.1}
  #allocation0 [shape = 's32[1]{0}', space=sflag, size = 0x4, scoped, tag = 'scoped memory for mul.1']
  %s0 = inlined_call_operand.vmem [shape: f32[17], index: 0, kind: input, shape index: {}]
  %s1 = inlined_call_operand.vmem [shape: f32[17], index: 1, kind: input, shape index: {}]
  %s2 = inlined_call_operand.vmem [shape: f32[17], index: 2, kind: output, shape index: {}]
  %v3 = vld [vmem:[%s0] sm:$0x1]
  %v4 = vld [vmem:[%s1] sm:$0x1]
  %5 = xla_tuple %v3, %v4
  %6 = xla_tuple %5
  %v7 = vmul.f32 %v3, %v4
  %8 = xla_tuple %v7
  %9 = vst [vmem:[%s2] sm:$0x1] %v7

// kernel: stgnn_forward.1
$region0: #{stgnn_forward.1}
  #allocation0 [shape = 'u32[]', space=smem, size = 0x4, offset = 0x4, fixed_abs, tag = 'smem constant byte address 0x4 - core index']
  #allocation1 [shape = 'u32[72,128]{1,0:T(1,128)}', space=vmem, size = 0x9000, scoped, tag = 'internal scratch']
  %s0 = inlined_call_operand.vmem [shape: bf16[128,128], index: 0, kind: input, shape index: {}]
  %s1 = inlined_call_operand.vmem [shape: bf16[128,128], index: 1, kind: input, shape index: {}]
  %s2 = inlined_call_operand.vmem [shape: bf16[2,128,128], index: 2, kind: input, shape index: {}]
  %s3 = inlined_call_operand.vmem [shape: f32[2,1,128], index: 3, kind: input, shape index: {}]
  %s4 = inlined_call_operand.vmem [shape: bf16[128,128], index: 4, kind: input, shape index: {}]
  %s5 = inlined_call_operand.vmem [shape: f32[1,128], index: 5, kind: input, shape index: {}]
  %s6 = inlined_call_operand.vmem [shape: f32[128,128], index: 6, kind: output, shape index: {}]
  %s7 = sld [smem:[#allocation0]]
  $region34: #{stgnn_forward.1} parent=0
    _
  %s9 = ssub.s32 1, %s7
  %s10 = scalar_select 0, %s9, %s7
  // Predicated region
  $region2: #{stgnn_forward.1} parent=0 // pred_check
    _
  $region3: #{stgnn_forward.1} parent=0 // pred_check_branch
    %12 = sbr.rel (0) target = $region5
  $region4: #{stgnn_forward.1} parent=0 // pred_region
    _
  $region5: #{stgnn_forward.1} parent=0 // pred_fallthru
    _
  // Predicated region
  $region6: #{stgnn_forward.1} parent=0 // pred_check
    _
  $region7: #{stgnn_forward.1} parent=0 // pred_check_branch
    %14 = sbr.rel (0) target = $region9
  $region8: #{stgnn_forward.1} parent=0 // pred_region
    _
  $region9: #{stgnn_forward.1} parent=0 // pred_fallthru
    _
  // Predicated region
  $region10: #{stgnn_forward.1} parent=0 // pred_check
    _
  $region11: #{stgnn_forward.1} parent=0 // pred_check_branch
    %16 = sbr.rel (0) target = $region13
  $region12: #{stgnn_forward.1} parent=0 // pred_region
    _
  $region13: #{stgnn_forward.1} parent=0 // pred_fallthru
    _
  // Predicated region
  $region14: #{stgnn_forward.1} parent=0 // pred_check
    _
  $region15: #{stgnn_forward.1} parent=0 // pred_check_branch
    %18 = sbr.rel (0) target = $region17
  $region16: #{stgnn_forward.1} parent=0 // pred_region
    _
  $region17: #{stgnn_forward.1} parent=0 // pred_fallthru
    _
  // Predicated region
  $region18: #{stgnn_forward.1} parent=0 // pred_check
    _
  $region19: #{stgnn_forward.1} parent=0 // pred_check_branch
    %20 = sbr.rel (0) target = $region21
  $region20: #{stgnn_forward.1} parent=0 // pred_region
    _
  $region21: #{stgnn_forward.1} parent=0 // pred_fallthru
    _
  // Predicated region
  $region22: #{stgnn_forward.1} parent=0 // pred_check
    _
  $region23: #{stgnn_forward.1} parent=0 // pred_check_branch
    %22 = sbr.rel (0) target = $region25
  $region24: #{stgnn_forward.1} parent=0 // pred_region
    _
  $region25: #{stgnn_forward.1} parent=0 // pred_fallthru
    _
  %v23 = vld [vmem:[%s0] sm:$0xf]
  %v24 = vld [vmem:[%s0 + $0x4] sm:$0xf]
  %v25 = vld [vmem:[%s0 + $0x8] sm:$0xf]
  %v26 = vld [vmem:[%s0 + $0xc] sm:$0xf]
  %v27 = vld [vmem:[%s0 + $0x10] sm:$0xf]
  %v28 = vld [vmem:[%s0 + $0x14] sm:$0xf]
  %v29 = vld [vmem:[%s0 + $0x18] sm:$0xf]
  %v30 = vld [vmem:[%s0 + $0x1c] sm:$0xf]
  %v31 = vld [vmem:[%s0 + $0x20] sm:$0xf]
  %v32 = vld [vmem:[%s0 + $0x24] sm:$0xf]
  %v33 = vld [vmem:[%s0 + $0x28] sm:$0xf]
  %v34 = vld [vmem:[%s0 + $0x2c] sm:$0xf]
  %v35 = vld [vmem:[%s0 + $0x30] sm:$0xf]
  %v36 = vld [vmem:[%s0 + $0x34] sm:$0xf]
  %v37 = vld [vmem:[%s0 + $0x38] sm:$0xf]
  %v38 = vld [vmem:[%s0 + $0x3c] sm:$0xf]
  %v39 = vld [vmem:[%s1] sm:$0xf]
  %v40 = vld [vmem:[%s1 + $0x4] sm:$0xf]
  %v41 = vld [vmem:[%s1 + $0x8] sm:$0xf]
  %v42 = vld [vmem:[%s1 + $0xc] sm:$0xf]
  %v43 = vld [vmem:[%s1 + $0x10] sm:$0xf]
  %v44 = vld [vmem:[%s1 + $0x14] sm:$0xf]
  %v45 = vld [vmem:[%s1 + $0x18] sm:$0xf]
  %v46 = vld [vmem:[%s1 + $0x1c] sm:$0xf]
  %v47 = vld [vmem:[%s1 + $0x20] sm:$0xf]
  %v48 = vld [vmem:[%s1 + $0x24] sm:$0xf]
  %v49 = vld [vmem:[%s1 + $0x28] sm:$0xf]
  %v50 = vld [vmem:[%s1 + $0x2c] sm:$0xf]
  %v51 = vld [vmem:[%s1 + $0x30] sm:$0xf]
  %v52 = vld [vmem:[%s1 + $0x34] sm:$0xf]
  %v53 = vld [vmem:[%s1 + $0x38] sm:$0xf]
  %v54 = vld [vmem:[%s1 + $0x3c] sm:$0xf]
  %v55 = vld [vmem:[%s2] sm:$0xf]
  %v56 = vld [vmem:[%s2 + $0x4] sm:$0xf]
  %v57 = vld [vmem:[%s2 + $0x8] sm:$0xf]
  %v58 = vld [vmem:[%s2 + $0xc] sm:$0xf]
  %v59 = vld [vmem:[%s2 + $0x10] sm:$0xf]
  %v60 = vld [vmem:[%s2 + $0x14] sm:$0xf]
  %v61 = vld [vmem:[%s2 + $0x18] sm:$0xf]
  %v62 = vld [vmem:[%s2 + $0x1c] sm:$0xf]
  %v63 = vld [vmem:[%s2 + $0x20] sm:$0xf]
  %v64 = vld [vmem:[%s2 + $0x24] sm:$0xf]
  %v65 = vld [vmem:[%s2 + $0x28] sm:$0xf]
  %v66 = vld [vmem:[%s2 + $0x2c] sm:$0xf]
  %v67 = vld [vmem:[%s2 + $0x30] sm:$0xf]
  %v68 = vld [vmem:[%s2 + $0x34] sm:$0xf]
  %v69 = vld [vmem:[%s2 + $0x38] sm:$0xf]
  %v70 = vld [vmem:[%s2 + $0x3c] sm:$0xf]
  %v87 = vunpack.c.l.b16 %v39
  %v88 = vunpack.c.l.b16 %v40
  %v89 = vunpack.c.l.b16 %v41
  %v90 = vunpack.c.l.b16 %v42
  %v91 = vunpack.c.l.b16 %v43
  %v92 = vunpack.c.l.b16 %v44
  %v93 = vunpack.c.l.b16 %v45
  %v94 = vunpack.c.l.b16 %v46
  %v95 = vunpack.c.l.b16 %v47
  %v96 = vunpack.c.l.b16 %v48
  %v97 = vunpack.c.l.b16 %v49
  %v98 = vunpack.c.l.b16 %v50
  %v99 = vunpack.c.l.b16 %v51
  %v100 = vunpack.c.l.b16 %v52
  %v101 = vunpack.c.l.b16 %v53
  %v102 = vunpack.c.l.b16 %v54
  %v103 = vpack.c.b16 %v88, %v87
  %v104 = vpack.c.b16 %v90, %v89
  %v105 = vpack.c.b16 %v92, %v91
  %v106 = vpack.c.b16 %v94, %v93
  %v107 = vpack.c.b16 %v96, %v95
  %v108 = vpack.c.b16 %v98, %v97
  %v109 = vpack.c.b16 %v100, %v99
  %v110 = vpack.c.b16 %v102, %v101
  %v135 = vunpack.c.l.b16 %v55
  %v136 = vunpack.c.l.b16 %v56
  %v137 = vunpack.c.l.b16 %v57
  %v138 = vunpack.c.l.b16 %v58
  %v139 = vunpack.c.l.b16 %v59
  %v140 = vunpack.c.l.b16 %v60
  %v141 = vunpack.c.l.b16 %v61
  %v142 = vunpack.c.l.b16 %v62
  %v143 = vunpack.c.l.b16 %v63
  %v144 = vunpack.c.l.b16 %v64
  %v145 = vunpack.c.l.b16 %v65
  %v146 = vunpack.c.l.b16 %v66
  %v147 = vunpack.c.l.b16 %v67
  %v148 = vunpack.c.l.b16 %v68
  %v149 = vunpack.c.l.b16 %v69
  %v150 = vunpack.c.l.b16 %v70
  %v151 = vpack.c.b16 %v136, %v135
  %v152 = vpack.c.b16 %v138, %v137
  %v153 = vpack.c.b16 %v140, %v139
  %v154 = vpack.c.b16 %v142, %v141
  %v155 = vpack.c.b16 %v144, %v143
  %v156 = vpack.c.b16 %v146, %v145
  %v157 = vpack.c.b16 %v148, %v147
  %v158 = vpack.c.b16 %v150, %v149
  %167 = vmatpush.bf16.msra.mxu0 %v158
  %168 = vmatpush.bf16.msra.mxu0 %v157
  %169 = vmatpush.bf16.msra.mxu0 %v156
  %170 = vmatpush.bf16.msra.mxu0 %v155
  %171 = vmatpush.bf16.msra.mxu0 %v154
  %172 = vmatpush.bf16.msra.mxu0 %v153
  %173 = vmatpush.bf16.msra.mxu0 %v152
  %174 = vmatpush.bf16.msra.mxu0 %v151
  %175 = vmatmul.bf16.gmra.mxu0 %v103
  %v176 = vpop.f32.mrf.mxu0
  %v177 = vadd.f32 0.0, %v176
  %v178 = vpop.f32.mrf.mxu0
  %v179 = vadd.f32 0.0, %v178
  %180 = vmatmul.bf16.gmra.mxu0 %v104
  %v181 = vpop.f32.mrf.mxu0
  %v182 = vadd.f32 0.0, %v181
  %v183 = vpop.f32.mrf.mxu0
  %v184 = vadd.f32 0.0, %v183
  %185 = vmatmul.bf16.gmra.mxu0 %v105
  %v186 = vpop.f32.mrf.mxu0
  %v187 = vadd.f32 0.0, %v186
  %v188 = vpop.f32.mrf.mxu0
  %v189 = vadd.f32 0.0, %v188
  %190 = vmatmul.bf16.gmra.mxu0 %v106
  %v191 = vpop.f32.mrf.mxu0
  %v192 = vadd.f32 0.0, %v191
  %v193 = vpop.f32.mrf.mxu0
  %v194 = vadd.f32 0.0, %v193
  %195 = vmatmul.bf16.gmra.mxu0 %v107
  %v196 = vpop.f32.mrf.mxu0
  %v197 = vadd.f32 0.0, %v196
  %v198 = vpop.f32.mrf.mxu0
  %v199 = vadd.f32 0.0, %v198
  %200 = vmatmul.bf16.gmra.mxu0 %v108
  %v201 = vpop.f32.mrf.mxu0
  %v202 = vadd.f32 0.0, %v201
  %v203 = vpop.f32.mrf.mxu0
  %v204 = vadd.f32 0.0, %v203
  %205 = vmatmul.bf16.gmra.mxu0 %v109
  %v206 = vpop.f32.mrf.mxu0
  %v207 = vadd.f32 0.0, %v206
  %v208 = vpop.f32.mrf.mxu0
  %v209 = vadd.f32 0.0, %v208
  %210 = vmatmul.bf16.gmra.mxu0 %v110
  %v211 = vpop.f32.mrf.mxu0
  %v212 = vadd.f32 0.0, %v211
  %v213 = vpop.f32.mrf.mxu0
  %v214 = vadd.f32 0.0, %v213
  %215 = vdwg.mxu0
  %v216 = vpack.c.bf16 %v179, %v177
  %v217 = vpack.c.bf16 %v184, %v182
  %v218 = vpack.c.bf16 %v189, %v187
  %v219 = vpack.c.bf16 %v194, %v192
  %v220 = vpack.c.bf16 %v199, %v197
  %v221 = vpack.c.bf16 %v204, %v202
  %v222 = vpack.c.bf16 %v209, %v207
  %v223 = vpack.c.bf16 %v214, %v212
  %v224 = vld [vmem:[%s3] sm:$0x1]
  %v226 = vperm.slane %v224, 0
  %v244 = vunpack.c.l.b16 %v23
  %v245 = vunpack.c.l.b16 %v24
  %v246 = vunpack.c.l.b16 %v25
  %v247 = vunpack.c.l.b16 %v26
  %v248 = vunpack.c.l.b16 %v27
  %v249 = vunpack.c.l.b16 %v28
  %v250 = vunpack.c.l.b16 %v29
  %v251 = vunpack.c.l.b16 %v30
  %v252 = vunpack.c.l.b16 %v31
  %v253 = vunpack.c.l.b16 %v32
  %v254 = vunpack.c.l.b16 %v33
  %v255 = vunpack.c.l.b16 %v34
  %v256 = vunpack.c.l.b16 %v35
  %v257 = vunpack.c.l.b16 %v36
  %v258 = vunpack.c.l.b16 %v37
  %v259 = vunpack.c.l.b16 %v38
  %v260 = vpack.c.b16 %v245, %v244
  %v261 = vpack.c.b16 %v247, %v246
  %v262 = vpack.c.b16 %v249, %v248
  %v263 = vpack.c.b16 %v251, %v250
  %v264 = vpack.c.b16 %v253, %v252
  %v265 = vpack.c.b16 %v255, %v254
  %v266 = vpack.c.b16 %v257, %v256
  %v267 = vpack.c.b16 %v259, %v258
  %276 = vmatpush.bf16.msra.mxu0 %v223
  %277 = vmatpush.bf16.msra.mxu0 %v222
  %278 = vmatpush.bf16.msra.mxu0 %v221
  %279 = vmatpush.bf16.msra.mxu0 %v220
  %280 = vmatpush.bf16.msra.mxu0 %v219
  %281 = vmatpush.bf16.msra.mxu0 %v218
  %282 = vmatpush.bf16.msra.mxu0 %v217
  %283 = vmatpush.bf16.msra.mxu0 %v216
  %284 = vmatmul.bf16.gmra.mxu0 %v260
  %v285 = vpop.f32.mrf.mxu0
  %v286 = vadd.f32 %v226, %v285
  %v287 = vpop.f32.mrf.mxu0
  %v288 = vadd.f32 %v226, %v287
  %289 = vmatmul.bf16.gmra.mxu0 %v261
  %v290 = vpop.f32.mrf.mxu0
  %v291 = vadd.f32 %v226, %v290
  %v292 = vpop.f32.mrf.mxu0
  %v293 = vadd.f32 %v226, %v292
  %294 = vmatmul.bf16.gmra.mxu0 %v262
  %v295 = vpop.f32.mrf.mxu0
  %v296 = vadd.f32 %v226, %v295
  %v297 = vpop.f32.mrf.mxu0
  %v298 = vadd.f32 %v226, %v297
  %299 = vmatmul.bf16.gmra.mxu0 %v263
  %v300 = vpop.f32.mrf.mxu0
  %v301 = vadd.f32 %v226, %v300
  %v302 = vpop.f32.mrf.mxu0
  %v303 = vadd.f32 %v226, %v302
  %304 = vmatmul.bf16.gmra.mxu0 %v264
  %v305 = vpop.f32.mrf.mxu0
  %v306 = vadd.f32 %v226, %v305
  %v307 = vpop.f32.mrf.mxu0
  %v308 = vadd.f32 %v226, %v307
  %309 = vmatmul.bf16.gmra.mxu0 %v265
  %v310 = vpop.f32.mrf.mxu0
  %v311 = vadd.f32 %v226, %v310
  %v312 = vpop.f32.mrf.mxu0
  %v313 = vadd.f32 %v226, %v312
  %314 = vmatmul.bf16.gmra.mxu0 %v266
  %v315 = vpop.f32.mrf.mxu0
  %v316 = vadd.f32 %v226, %v315
  %v317 = vpop.f32.mrf.mxu0
  %v318 = vadd.f32 %v226, %v317
  %319 = vmatmul.bf16.gmra.mxu0 %v267
  %v320 = vpop.f32.mrf.mxu0
  %v321 = vadd.f32 %v226, %v320
  %v322 = vpop.f32.mrf.mxu0
  %v323 = vadd.f32 %v226, %v322
  %324 = vdwg.mxu0
  %v325 = vmax.f32 %v286, 0.0
  %v326 = vmax.f32 %v288, 0.0
  %v327 = vmax.f32 %v291, 0.0
  %v328 = vmax.f32 %v293, 0.0
  %v329 = vmax.f32 %v296, 0.0
  %v330 = vmax.f32 %v298, 0.0
  %v331 = vmax.f32 %v301, 0.0
  %v332 = vmax.f32 %v303, 0.0
  %v333 = vmax.f32 %v306, 0.0
  %v334 = vmax.f32 %v308, 0.0
  %v335 = vmax.f32 %v311, 0.0
  %v336 = vmax.f32 %v313, 0.0
  %v337 = vmax.f32 %v316, 0.0
  %v338 = vmax.f32 %v318, 0.0
  %v339 = vmax.f32 %v321, 0.0
  %v340 = vmax.f32 %v323, 0.0
  %v341 = vpack.c.bf16 %v326, %v325
  %v342 = vpack.c.bf16 %v328, %v327
  %v343 = vpack.c.bf16 %v330, %v329
  %v344 = vpack.c.bf16 %v332, %v331
  %v345 = vpack.c.bf16 %v334, %v333
  %v346 = vpack.c.bf16 %v336, %v335
  %v347 = vpack.c.bf16 %v338, %v337
  %v348 = vpack.c.bf16 %v340, %v339
  %s349 = scalar_lea.vmem %s2, 64
  %v350 = vld [vmem:[%s349] sm:$0xf]
  %v351 = vld [vmem:[%s349 + $0x4] sm:$0xf]
  %v352 = vld [vmem:[%s349 + $0x8] sm:$0xf]
  %v353 = vld [vmem:[%s349 + $0xc] sm:$0xf]
  %v354 = vld [vmem:[%s349 + $0x10] sm:$0xf]
  %v355 = vld [vmem:[%s349 + $0x14] sm:$0xf]
  %v356 = vld [vmem:[%s349 + $0x18] sm:$0xf]
  %v357 = vld [vmem:[%s349 + $0x1c] sm:$0xf]
  %v358 = vld [vmem:[%s349 + $0x20] sm:$0xf]
  %v359 = vld [vmem:[%s349 + $0x24] sm:$0xf]
  %v360 = vld [vmem:[%s349 + $0x28] sm:$0xf]
  %v361 = vld [vmem:[%s349 + $0x2c] sm:$0xf]
  %v362 = vld [vmem:[%s349 + $0x30] sm:$0xf]
  %v363 = vld [vmem:[%s349 + $0x34] sm:$0xf]
  %v364 = vld [vmem:[%s349 + $0x38] sm:$0xf]
  %v365 = vld [vmem:[%s349 + $0x3c] sm:$0xf]
  %v382 = vunpack.c.l.b16 %v350
  %v383 = vunpack.c.l.b16 %v351
  %v384 = vunpack.c.l.b16 %v352
  %v385 = vunpack.c.l.b16 %v353
  %v386 = vunpack.c.l.b16 %v354
  %v387 = vunpack.c.l.b16 %v355
  %v388 = vunpack.c.l.b16 %v356
  %v389 = vunpack.c.l.b16 %v357
  %v390 = vunpack.c.l.b16 %v358
  %v391 = vunpack.c.l.b16 %v359
  %v392 = vunpack.c.l.b16 %v360
  %v393 = vunpack.c.l.b16 %v361
  %v394 = vunpack.c.l.b16 %v362
  %v395 = vunpack.c.l.b16 %v363
  %v396 = vunpack.c.l.b16 %v364
  %v397 = vunpack.c.l.b16 %v365
  %v398 = vpack.c.b16 %v383, %v382
  %v399 = vpack.c.b16 %v385, %v384
  %v400 = vpack.c.b16 %v387, %v386
  %v401 = vpack.c.b16 %v389, %v388
  %v402 = vpack.c.b16 %v391, %v390
  %v403 = vpack.c.b16 %v393, %v392
  %v404 = vpack.c.b16 %v395, %v394
  %v405 = vpack.c.b16 %v397, %v396
  %414 = vmatpush.bf16.msra.mxu0 %v405
  %415 = vmatpush.bf16.msra.mxu0 %v404
  %416 = vmatpush.bf16.msra.mxu0 %v403
  %417 = vmatpush.bf16.msra.mxu0 %v402
  %418 = vmatpush.bf16.msra.mxu0 %v401
  %419 = vmatpush.bf16.msra.mxu0 %v400
  %420 = vmatpush.bf16.msra.mxu0 %v399
  %421 = vmatpush.bf16.msra.mxu0 %v398
  %422 = vmatmul.bf16.gmra.mxu0 %v341
  %v423 = vpop.f32.mrf.mxu0
  %v424 = vadd.f32 0.0, %v423
  %v425 = vpop.f32.mrf.mxu0
  %v426 = vadd.f32 0.0, %v425
  %427 = vmatmul.bf16.gmra.mxu0 %v342
  %v428 = vpop.f32.mrf.mxu0
  %v429 = vadd.f32 0.0, %v428
  %v430 = vpop.f32.mrf.mxu0
  %v431 = vadd.f32 0.0, %v430
  %432 = vmatmul.bf16.gmra.mxu0 %v343
  %v433 = vpop.f32.mrf.mxu0
  %v434 = vadd.f32 0.0, %v433
  %v435 = vpop.f32.mrf.mxu0
  %v436 = vadd.f32 0.0, %v435
  %437 = vmatmul.bf16.gmra.mxu0 %v344
  %v438 = vpop.f32.mrf.mxu0
  %v439 = vadd.f32 0.0, %v438
  %v440 = vpop.f32.mrf.mxu0
  %v441 = vadd.f32 0.0, %v440
  %442 = vmatmul.bf16.gmra.mxu0 %v345
  %v443 = vpop.f32.mrf.mxu0
  %v444 = vadd.f32 0.0, %v443
  %v445 = vpop.f32.mrf.mxu0
  %v446 = vadd.f32 0.0, %v445
  %447 = vmatmul.bf16.gmra.mxu0 %v346
  %v448 = vpop.f32.mrf.mxu0
  %v449 = vadd.f32 0.0, %v448
  %v450 = vpop.f32.mrf.mxu0
  %v451 = vadd.f32 0.0, %v450
  %452 = vmatmul.bf16.gmra.mxu0 %v347
  %v453 = vpop.f32.mrf.mxu0
  %v454 = vadd.f32 0.0, %v453
  %v455 = vpop.f32.mrf.mxu0
  %v456 = vadd.f32 0.0, %v455
  %457 = vmatmul.bf16.gmra.mxu0 %v348
  %v458 = vpop.f32.mrf.mxu0
  %v459 = vadd.f32 0.0, %v458
  %v460 = vpop.f32.mrf.mxu0
  %v461 = vadd.f32 0.0, %v460
  %462 = vdwg.mxu0
  %v463 = vpack.c.bf16 %v426, %v424
  %v464 = vpack.c.bf16 %v431, %v429
  %v465 = vpack.c.bf16 %v436, %v434
  %v466 = vpack.c.bf16 %v441, %v439
  %v467 = vpack.c.bf16 %v446, %v444
  %v468 = vpack.c.bf16 %v451, %v449
  %v469 = vpack.c.bf16 %v456, %v454
  %v470 = vpack.c.bf16 %v461, %v459
  %s471 = scalar_lea.vmem %s3, 1
  %v472 = vld [vmem:[%s471] sm:$0x1]
  %v474 = vperm.slane %v472, 0
  %476 = vmatpush.bf16.msra.mxu0 %v470
  %477 = vmatpush.bf16.msra.mxu0 %v469
  %478 = vmatpush.bf16.msra.mxu0 %v468
  %479 = vmatpush.bf16.msra.mxu0 %v467
  %480 = vmatpush.bf16.msra.mxu0 %v466
  %481 = vmatpush.bf16.msra.mxu0 %v465
  %482 = vmatpush.bf16.msra.mxu0 %v464
  %483 = vmatpush.bf16.msra.mxu0 %v463
  %484 = vmatmul.bf16.gmra.mxu0 %v260
  %v485 = vpop.f32.mrf.mxu0
  %v486 = vadd.f32 %v474, %v485
  %v487 = vpop.f32.mrf.mxu0
  %v488 = vadd.f32 %v474, %v487
  %489 = vmatmul.bf16.gmra.mxu0 %v261
  %v490 = vpop.f32.mrf.mxu0
  %v491 = vadd.f32 %v474, %v490
  %v492 = vpop.f32.mrf.mxu0
  %v493 = vadd.f32 %v474, %v492
  %494 = vmatmul.bf16.gmra.mxu0 %v262
  %v495 = vpop.f32.mrf.mxu0
  %v496 = vadd.f32 %v474, %v495
  %v497 = vpop.f32.mrf.mxu0
  %v498 = vadd.f32 %v474, %v497
  %499 = vmatmul.bf16.gmra.mxu0 %v263
  %v500 = vpop.f32.mrf.mxu0
  %v501 = vadd.f32 %v474, %v500
  %v502 = vpop.f32.mrf.mxu0
  %v503 = vadd.f32 %v474, %v502
  %504 = vmatmul.bf16.gmra.mxu0 %v264
  %v505 = vpop.f32.mrf.mxu0
  %v506 = vadd.f32 %v474, %v505
  %v507 = vpop.f32.mrf.mxu0
  %v508 = vadd.f32 %v474, %v507
  %509 = vmatmul.bf16.gmra.mxu0 %v265
  %v510 = vpop.f32.mrf.mxu0
  %v511 = vadd.f32 %v474, %v510
  %v512 = vpop.f32.mrf.mxu0
  %v513 = vadd.f32 %v474, %v512
  %514 = vmatmul.bf16.gmra.mxu0 %v266
  %v515 = vpop.f32.mrf.mxu0
  %v516 = vadd.f32 %v474, %v515
  %v517 = vpop.f32.mrf.mxu0
  %v518 = vadd.f32 %v474, %v517
  %519 = vmatmul.bf16.gmra.mxu0 %v267
  %v520 = vpop.f32.mrf.mxu0
  %v521 = vadd.f32 %v474, %v520
  %v522 = vpop.f32.mrf.mxu0
  %v523 = vadd.f32 %v474, %v522
  %524 = vdwg.mxu0
  %v525 = vmax.f32 %v486, 0.0
  %v526 = vmax.f32 %v488, 0.0
  %v527 = vmax.f32 %v491, 0.0
  %v528 = vmax.f32 %v493, 0.0
  %v529 = vmax.f32 %v496, 0.0
  %v530 = vmax.f32 %v498, 0.0
  %v531 = vmax.f32 %v501, 0.0
  %v532 = vmax.f32 %v503, 0.0
  %v533 = vmax.f32 %v506, 0.0
  %v534 = vmax.f32 %v508, 0.0
  %v535 = vmax.f32 %v511, 0.0
  %v536 = vmax.f32 %v513, 0.0
  %v537 = vmax.f32 %v516, 0.0
  %v538 = vmax.f32 %v518, 0.0
  %v539 = vmax.f32 %v521, 0.0
  %v540 = vmax.f32 %v523, 0.0
  %v541 = vpack.c.bf16 %v526, %v525
  %v542 = vpack.c.bf16 %v528, %v527
  %v543 = vpack.c.bf16 %v530, %v529
  %v544 = vpack.c.bf16 %v532, %v531
  %v545 = vpack.c.bf16 %v534, %v533
  %v546 = vpack.c.bf16 %v536, %v535
  %v547 = vpack.c.bf16 %v538, %v537
  %v548 = vpack.c.bf16 %v540, %v539
  %v549 = vld [vmem:[%s4] sm:$0xf]
  %v550 = vld [vmem:[%s4 + $0x4] sm:$0xf]
  %v551 = vld [vmem:[%s4 + $0x8] sm:$0xf]
  %v552 = vld [vmem:[%s4 + $0xc] sm:$0xf]
  %v553 = vld [vmem:[%s4 + $0x10] sm:$0xf]
  %v554 = vld [vmem:[%s4 + $0x14] sm:$0xf]
  %v555 = vld [vmem:[%s4 + $0x18] sm:$0xf]
  %v556 = vld [vmem:[%s4 + $0x1c] sm:$0xf]
  %v557 = vld [vmem:[%s4 + $0x20] sm:$0xf]
  %v558 = vld [vmem:[%s4 + $0x24] sm:$0xf]
  %v559 = vld [vmem:[%s4 + $0x28] sm:$0xf]
  %v560 = vld [vmem:[%s4 + $0x2c] sm:$0xf]
  %v561 = vld [vmem:[%s4 + $0x30] sm:$0xf]
  %v562 = vld [vmem:[%s4 + $0x34] sm:$0xf]
  %v563 = vld [vmem:[%s4 + $0x38] sm:$0xf]
  %v564 = vld [vmem:[%s4 + $0x3c] sm:$0xf]
  %v565 = vld [vmem:[%s5] sm:$0x1]
  %v567 = vperm.slane %v565, 0
  %v585 = vunpack.c.l.b16 %v549
  %v586 = vunpack.c.l.b16 %v550
  %v587 = vunpack.c.l.b16 %v551
  %v588 = vunpack.c.l.b16 %v552
  %v589 = vunpack.c.l.b16 %v553
  %v590 = vunpack.c.l.b16 %v554
  %v591 = vunpack.c.l.b16 %v555
  %v592 = vunpack.c.l.b16 %v556
  %v593 = vunpack.c.l.b16 %v557
  %v594 = vunpack.c.l.b16 %v558
  %v595 = vunpack.c.l.b16 %v559
  %v596 = vunpack.c.l.b16 %v560
  %v597 = vunpack.c.l.b16 %v561
  %v598 = vunpack.c.l.b16 %v562
  %v599 = vunpack.c.l.b16 %v563
  %v600 = vunpack.c.l.b16 %v564
  %v601 = vpack.c.b16 %v586, %v585
  %v602 = vpack.c.b16 %v588, %v587
  %v603 = vpack.c.b16 %v590, %v589
  %v604 = vpack.c.b16 %v592, %v591
  %v605 = vpack.c.b16 %v594, %v593
  %v606 = vpack.c.b16 %v596, %v595
  %v607 = vpack.c.b16 %v598, %v597
  %v608 = vpack.c.b16 %v600, %v599
  %617 = vmatpush.bf16.msra.mxu0 %v608
  %618 = vmatpush.bf16.msra.mxu0 %v607
  %619 = vmatpush.bf16.msra.mxu0 %v606
  %620 = vmatpush.bf16.msra.mxu0 %v605
  %621 = vmatpush.bf16.msra.mxu0 %v604
  %622 = vmatpush.bf16.msra.mxu0 %v603
  %623 = vmatpush.bf16.msra.mxu0 %v602
  %624 = vmatpush.bf16.msra.mxu0 %v601
  %625 = vmatmul.bf16.gmra.mxu0 %v541
  %v626 = vpop.f32.mrf.mxu0
  %v627 = vadd.f32 %v567, %v626
  %v628 = vpop.f32.mrf.mxu0
  %v629 = vadd.f32 %v567, %v628
  %630 = vmatmul.bf16.gmra.mxu0 %v542
  %v631 = vpop.f32.mrf.mxu0
  %v632 = vadd.f32 %v567, %v631
  %v633 = vpop.f32.mrf.mxu0
  %v634 = vadd.f32 %v567, %v633
  %635 = vmatmul.bf16.gmra.mxu0 %v543
  %v636 = vpop.f32.mrf.mxu0
  %v637 = vadd.f32 %v567, %v636
  %v638 = vpop.f32.mrf.mxu0
  %v639 = vadd.f32 %v567, %v638
  %640 = vmatmul.bf16.gmra.mxu0 %v544
  %v641 = vpop.f32.mrf.mxu0
  %v642 = vadd.f32 %v567, %v641
  %v643 = vpop.f32.mrf.mxu0
  %v644 = vadd.f32 %v567, %v643
  %645 = vmatmul.bf16.gmra.mxu0 %v545
  %v646 = vpop.f32.mrf.mxu0
  %v647 = vadd.f32 %v567, %v646
  %v648 = vpop.f32.mrf.mxu0
  %v649 = vadd.f32 %v567, %v648
  %650 = vmatmul.bf16.gmra.mxu0 %v546
  %v651 = vpop.f32.mrf.mxu0
  %v652 = vadd.f32 %v567, %v651
  %v653 = vpop.f32.mrf.mxu0
  %v654 = vadd.f32 %v567, %v653
  %655 = vmatmul.bf16.gmra.mxu0 %v547
  %v656 = vpop.f32.mrf.mxu0
  %v657 = vadd.f32 %v567, %v656
  %v658 = vpop.f32.mrf.mxu0
  %v659 = vadd.f32 %v567, %v658
  %660 = vmatmul.bf16.gmra.mxu0 %v548
  %v661 = vpop.f32.mrf.mxu0
  %v662 = vadd.f32 %v567, %v661
  %v663 = vpop.f32.mrf.mxu0
  %v664 = vadd.f32 %v567, %v663
  %665 = vdwg.mxu0
  %666 = vst [vmem:[%s6] sm:$0xff] %v627
  %667 = vst [vmem:[%s6 + $0x8] sm:$0xff] %v629
  %668 = vst [vmem:[%s6 + $0x10] sm:$0xff] %v632
  %669 = vst [vmem:[%s6 + $0x18] sm:$0xff] %v634
  %670 = vst [vmem:[%s6 + $0x20] sm:$0xff] %v637
  %671 = vst [vmem:[%s6 + $0x28] sm:$0xff] %v639
  %672 = vst [vmem:[%s6 + $0x30] sm:$0xff] %v642
  %673 = vst [vmem:[%s6 + $0x38] sm:$0xff] %v644
  %674 = vst [vmem:[%s6 + $0x40] sm:$0xff] %v647
  %675 = vst [vmem:[%s6 + $0x48] sm:$0xff] %v649
  %676 = vst [vmem:[%s6 + $0x50] sm:$0xff] %v652
  %677 = vst [vmem:[%s6 + $0x58] sm:$0xff] %v654
  %678 = vst [vmem:[%s6 + $0x60] sm:$0xff] %v657
  %679 = vst [vmem:[%s6 + $0x68] sm:$0xff] %v659
  %680 = vst [vmem:[%s6 + $0x70] sm:$0xff] %v662
  %681 = vst [vmem:[%s6 + $0x78] sm:$0xff] %v664
  // Predicated region
  $region26: #{stgnn_forward.1} parent=0 // pred_check
    _
  $region27: #{stgnn_forward.1} parent=0 // pred_check_branch
    %683 = sbr.rel (0) target = $region29
  $region28: #{stgnn_forward.1} parent=0 // pred_region
    _
  $region29: #{stgnn_forward.1} parent=0 // pred_fallthru
    _
  // Predicated region
  $region30: #{stgnn_forward.1} parent=0 // pred_check
    _
  $region31: #{stgnn_forward.1} parent=0 // pred_check_branch
    %685 = sbr.rel (0) target = $region33
  $region32: #{stgnn_forward.1} parent=0 // pred_region
    _
  $region33: #{stgnn_forward.1} parent=0 // pred_fallthru
    _

</llo_original>
